<compile_context>
chip_gen: v6e
topology: v6e:2x2x1
jax: 0.10.0
libtpu: 0.0.40
codegen_flags: <defaults>
</compile_context>

<pallas_src>
import jax
import jax.numpy as jnp
from jax.experimental import pallas as pl
from jax.experimental.pallas import tpu as pltpu

_LANE = 128
_SUBLANE = 8
_NCORES = 2                       # parallel leading grid axis (2-TC chips); trivial on 1-TC
_MAX_BLOCK_ROWS = 4096            # 4096x128 f32 = 2 MiB per tile
_VMEM_BUDGET = 16 * 1024 * 1024   # budget for (double-buffered inputs + accumulator)
_VMEM_LIMIT = 32 * 1024 * 1024    # explicit scoped-VMEM limit (safe on v5e/v6e/v7x)

_SUPPORTED_LOSSES = ('l1', 'mse', 'smooth_l1')
# TODO(synk): 'ce', 'smape', 'mape', 'mase' entries of the original loss_dict are not
# implemented (not needed for this config; the zero-pad scheme assumes error(0,0)=0).


def _round_up(x, m):
    return (x + m - 1) // m * m


def _make_kernel(plan, num_in):
    """plan: list of (idx_a, idx_b, loss_kind, static_coeff) into the unique inputs."""

    def kernel(*refs):
        in_refs = refs[:num_in]
        o_ref = refs[num_in]
        acc_ref = refs[num_in + 1]
        t = pl.program_id(1)                      # reduction ("arbitrary") axis

        @pl.when(t == 0)
        def _init():
            acc_ref[...] = jnp.zeros_like(acc_ref)

        # Load each unique operand tile once; cast to f32 on the loaded tile.
        vals = [r[...].astype(jnp.float32) for r in in_refs]

        step = None
        for ia, ib, kind, coeff in plan:
            d = vals[ia] - vals[ib]
            if kind == 'l1':
                e = jnp.abs(d)
            elif kind == 'mse':
                e = d * d
            else:  # smooth_l1, beta = 1.0
                ad = jnp.abs(d)
                e = jnp.where(ad < 1.0, 0.5 * d * d, ad - 0.5)
            w = jnp.float32(coeff) * e
            step = w if step is None else step + w

        # vreg-wide VPU accumulation; no per-step cross-lane reduce.
        acc_ref[...] += step

        @pl.when(t == pl.num_programs(1) - 1)
        def _finalize():
            total = jnp.sum(acc_ref[...], keepdims=True)            # (1,1), once per core
            o_ref[...] = jnp.broadcast_to(total, (_SUBLANE, _LANE))

    return kernel


def _fused_weighted_error_sum(terms, *, max_block_rows=_MAX_BLOCK_ROWS):
    """sum_i coeff_i * sum(err_i(a_i, b_i)) in a single pallas_call.

    terms: list of (a, b, loss_kind, coeff).  Callers fold 1/N (means) and any
    loss weights into `coeff`.  Operands repeated across terms are streamed
    from HBM only once.  Zero padding is sum-neutral for l1/mse/smooth_l1.
    """
    terms = list(terms)
    if not terms:
        return jnp.float32(0.0)

    # Dedupe operands by identity so shared tensors (e.g. outputs_time) load once.
    uniques, index_of, plan = [], {}, []
    for a, b, kind, coeff in terms:
        if kind not in _SUPPORTED_LOSSES:
            raise NotImplementedError(kind)
        assert a.shape == b.shape, (a.shape, b.shape)
        for x in (a, b):
            if id(x) not in index_of:
                index_of[id(x)] = len(uniques)
                uniques.append(x)
        plan.append((index_of[id(a)], index_of[id(b)], kind, float(coeff)))

    # Tile sizing: biggest lane-dense block that keeps 2 buffers per input stream
    # plus the accumulator under the VMEM budget (multiple of 8 sublanes).
    rows_max = max(_round_up((x.size + _LANE - 1) // _LANE, _SUBLANE) for x in uniques)
    per_row_bytes = _LANE * 4                                   # accumulator row (f32)
    for x in uniques:
        per_row_bytes += 2 * _LANE * x.dtype.itemsize           # double-buffered input
    budget_rows = (_VMEM_BUDGET // per_row_bytes) // _SUBLANE * _SUBLANE
    block_rows = max(_SUBLANE, min(max_block_rows, rows_max, budget_rows))

    padded_rows = _round_up(rows_max, _NCORES * block_rows)
    tiles_per_core = (padded_rows // block_rows) // _NCORES

    def prep(x):
        flat = x.reshape(-1)
        pad = padded_rows * _LANE - flat.size
        if pad:                       # static; skip the HBM pad copy when aligned
            flat = jnp.pad(flat, (0, pad))
        return flat.reshape(padded_rows, _LANE)   # native dtype; cast happens in-kernel

    ins = [prep(x) for x in uniques]
    idx_map = lambda c, t: (c * tiles_per_core + t, 0)

    out = pl.pallas_call(
        _make_kernel(plan, len(ins)),
        out_shape=jax.ShapeDtypeStruct((_NCORES * _SUBLANE, _LANE), jnp.float32),
        grid=(_NCORES, tiles_per_core),
        in_specs=[pl.BlockSpec((block_rows, _LANE), idx_map) for _ in ins],
        out_specs=pl.BlockSpec((_SUBLANE, _LANE), lambda c, t: (c, 0)),
        scratch_shapes=[pltpu.VMEM((block_rows, _LANE), jnp.float32)],
        compiler_params=pltpu.CompilerParams(
            dimension_semantics=("parallel", "arbitrary"),
            vmem_limit_bytes=_VMEM_LIMIT),
    )(*ins)

    # One per-core partial scalar lives at row c*8, col 0 of its slab.
    return jnp.sum(out[::_SUBLANE, 0])


# ---------------------------------------------------------------------------
# DistillationLoss forward (plain-JAX glue around the two fused Pallas calls).
# ---------------------------------------------------------------------------
class DistillationLoss:
    def __init__(self, distill_loss='l1', logits_loss='mse', task_loss='mse',
                 feature_w=0.01, logits_w=1.0, task_w=1.0, pred_len=1):
        for name in (distill_loss, logits_loss, task_loss):
            if name not in _SUPPORTED_LOSSES:
                raise NotImplementedError(name)
        self.distill_loss = distill_loss
        self.logits_loss = logits_loss
        self.task_loss = task_loss
        self.task_w = float(task_w)
        self.logits_w = float(logits_w)
        self.feature_w = float(feature_w)
        self.f_dim = -1
        self.pred_len = pred_len

    def __call__(self, outputs, batch_y):
        outputs_text = outputs['outputs_text']
        outputs_time = outputs['outputs_time']
        inter_time = outputs['intermidiate_time']
        inter_text = outputs['intermidiate_text']

        y = batch_y[:, -self.pred_len:, self.f_dim:]
        ot = outputs_time[:, -self.pred_len:, self.f_dim:]
        ox = outputs_text[:, -self.pred_len:, self.f_dim:]

        # Fused call #1: task loss + logits loss share the streamed `ot` tiles.
        main_terms = [
            (ot, y, self.task_loss, self.task_w / ot.size),
            (ot, ox, self.logits_loss, self.logits_w / ot.size),
        ]
        total = _fused_weighted_error_sum(main_terms)

        # Fused call #2: every intermediate feature pair in one kernel; 0.8**idx,
        # the per-pair mean and feature_w are folded into static coefficients.
        if inter_time is not None:
            feat_terms = [
                (ft, fx, self.distill_loss, self.feature_w * (0.8 ** idx) / ft.size)
                for idx, (ft, fx) in enumerate(zip(inter_time[::-1], inter_text[::-1]))
            ]
            if feat_terms:
                total = total + _fused_weighted_error_sum(feat_terms)
        return total


if __name__ == "__main__":
    key = jax.random.PRNGKey(0)
    B, T, C, D, PRED = 2, 8, 4, 32, 4     # batch, seq, out-features, hidden, pred_len
    n_blk = 3                             # number of intermediate feature pairs

    ks = jax.random.split(key, 2 * n_blk + 3)
    inter_time = [jax.random.normal(ks[i], (B, T, D), jnp.float32) for i in range(n_blk)]
    inter_text = [jax.random.normal(ks[n_blk + i], (B, T, D), jnp.float32) for i in range(n_blk)]
    outputs_time = jax.random.normal(ks[-3], (B, T, C), jnp.float32)
    outputs_text = jax.random.normal(ks[-2], (B, T, C), jnp.float32)
    batch_y = jax.random.normal(ks[-1], (B, T, C), jnp.float32)

    loss_mod = DistillationLoss('l1', 'mse', 'mse',
                                feature_w=0.01, logits_w=1.0, task_w=1.0, pred_len=PRED)
    outputs = {'outputs_text': outputs_text, 'outputs_time': outputs_time,
               'intermidiate_time': inter_time, 'intermidiate_text': inter_text}

    total = jax.block_until_ready(loss_mod(outputs, batch_y))

    # pure-JAX reference (same math, no Pallas)
    feat_ref = sum((0.8 ** i) * jnp.mean(jnp.abs(a - b))
                   for i, (a, b) in enumerate(zip(inter_time[::-1], inter_text[::-1])))
    y_ref = batch_y[:, -PRED:, -1:]
    ot_ref = outputs_time[:, -PRED:, -1:]
    ox_ref = outputs_text[:, -PRED:, -1:]
    ref = (1.0 * jnp.mean((ot_ref - y_ref) ** 2)
           + 1.0 * jnp.mean((ot_ref - ox_ref) ** 2)
           + 0.01 * feat_ref)
    assert abs(float(total) - float(ref)) < 1e-5 * (1.0 + abs(float(ref))), \
        (float(total), float(ref))

    # Extra check: multi-tile accumulation path (forced small block), shared-operand
    # dedupe, multi-term fusion and in-kernel bf16 -> f32 cast.
    ka, kb = jax.random.split(ks[0])
    a = jax.random.normal(ka, (2, 8, 512), jnp.float32)
    b = jax.random.normal(kb, (2, 8, 512), jnp.float32).astype(jnp.bfloat16)
    got = _fused_weighted_error_sum(
        [(a, b, 'l1', 1.0 / a.size), (a, b, 'smooth_l1', 0.5 / a.size)],
        max_block_rows=8)
    b32 = b.astype(jnp.float32)
    d = a - b32
    ad = jnp.abs(d)
    want = jnp.mean(ad) + 0.5 * jnp.mean(jnp.where(ad < 1.0, 0.5 * d * d, ad - 0.5))
    got = jax.block_until_ready(got)
    assert abs(float(got) - float(want)) < 1e-4, (float(got), float(want))

    print("KERNEL_OK")
</pallas_src>

<mosaic_0001>
module attributes {stable_mosaic.version = 11 : i64} {
  func.func @kernel(%arg0: i32, %arg1: i32, %arg2: memref<8x128xf32, #tpu.memory_space<vmem>>, %arg3: memref<8x128xf32, #tpu.memory_space<vmem>>, %arg4: memref<8x128xf32, #tpu.memory_space<vmem>>, %arg5: memref<8x128xf32, #tpu.memory_space<vmem>>, %arg6: memref<8x128xf32, #tpu.memory_space<vmem>>) attributes {dimension_semantics = [#tpu.dimension_semantics<parallel>, #tpu.dimension_semantics<arbitrary>], iteration_bounds = array<i64: 2, 1>, scalar_prefetch = 0 : i64, scratch_operands = 1 : i64, tpu.core_type = #tpu.core_type<tc>, window_params = [{transform_indices = @transform_0, window_bounds = array<i64: 8, 128>}, {transform_indices = @transform_1, window_bounds = array<i64: 8, 128>}, {transform_indices = @transform_2, window_bounds = array<i64: 8, 128>}, {transform_indices = @transform_3, window_bounds = array<i64: 8, 128>}]} {
    %c0_i32 = arith.constant 0 : i32
    %0 = arith.cmpi eq, %arg1, %c0_i32 : i32
    %1 = arith.extui %0 : i1 to i32
    %c0_i32_0 = arith.constant 0 : i32
    %2 = arith.cmpi ne, %1, %c0_i32_0 : i32
    scf.if %2 {
      %cst_13 = arith.constant 0.000000e+00 : f32
      %21 = vector.broadcast %cst_13 : f32 to vector<8x128xf32>
      %c0_14 = arith.constant 0 : index
      %c0_15 = arith.constant 0 : index
      %22 = vector.load %arg6[%c0_14, %c0_15] : memref<8x128xf32, #tpu.memory_space<vmem>>, vector<8x128xf32>
      tpu.vector_store %arg6[%c0_14, %c0_15], %21 {strides = array<i32>} : memref<8x128xf32, #tpu.memory_space<vmem>>, vector<8x128xf32>,
    } else {
    }
    %c0 = arith.constant 0 : index
    %c0_1 = arith.constant 0 : index
    %3 = vector.load %arg2[%c0, %c0_1] : memref<8x128xf32, #tpu.memory_space<vmem>>, vector<8x128xf32>
    %c0_2 = arith.constant 0 : index
    %c0_3 = arith.constant 0 : index
    %4 = vector.load %arg3[%c0_2, %c0_3] : memref<8x128xf32, #tpu.memory_space<vmem>>, vector<8x128xf32>
    %c0_4 = arith.constant 0 : index
    %c0_5 = arith.constant 0 : index
    %5 = vector.load %arg4[%c0_4, %c0_5] : memref<8x128xf32, #tpu.memory_space<vmem>>, vector<8x128xf32>
    %6 = arith.subf %3, %4 : vector<8x128xf32>
    %7 = arith.mulf %6, %6 : vector<8x128xf32>
    %cst = arith.constant 1.250000e-01 : f32
    %8 = vector.broadcast %cst : f32 to vector<8x128xf32>
    %9 = arith.mulf %8, %7 : vector<8x128xf32>
    %10 = arith.subf %3, %5 : vector<8x128xf32>
    %11 = arith.mulf %10, %10 : vector<8x128xf32>
    %cst_6 = arith.constant 1.250000e-01 : f32
    %12 = vector.broadcast %cst_6 : f32 to vector<8x128xf32>
    %13 = arith.mulf %12, %11 : vector<8x128xf32>
    %14 = arith.addf %9, %13 : vector<8x128xf32>
    %c0_7 = arith.constant 0 : index
    %c0_8 = arith.constant 0 : index
    %15 = vector.load %arg6[%c0_7, %c0_8] : memref<8x128xf32, #tpu.memory_space<vmem>>, vector<8x128xf32>
    %16 = arith.addf %15, %14 : vector<8x128xf32>
    %c0_9 = arith.constant 0 : index
    %c0_10 = arith.constant 0 : index
    %17 = vector.load %arg6[%c0_9, %c0_10] : memref<8x128xf32, #tpu.memory_space<vmem>>, vector<8x128xf32>
    tpu.vector_store %arg6[%c0_9, %c0_10], %16 {strides = array<i32>} : memref<8x128xf32, #tpu.memory_space<vmem>>, vector<8x128xf32>,
    %c0_i32_11 = arith.constant 0 : i32
    %18 = arith.cmpi eq, %arg1, %c0_i32_11 : i32
    %19 = arith.extui %18 : i1 to i32
    %c0_i32_12 = arith.constant 0 : i32
    %20 = arith.cmpi ne, %19, %c0_i32_12 : i32
    scf.if %20 {
      %c0_13 = arith.constant 0 : index
      %c0_14 = arith.constant 0 : index
      %21 = vector.load %arg6[%c0_13, %c0_14] : memref<8x128xf32, #tpu.memory_space<vmem>>, vector<8x128xf32>
      %22 = vector.shape_cast %21 : vector<8x128xf32> to vector<1x8x128xf32>
      %cst_15 = arith.constant dense<0.000000e+00> : vector<1xf32>
      %23 = vector.multi_reduction <add>, %22, %cst_15 [1, 2] : vector<1x8x128xf32> to vector<1xf32>
      %24 = vector.shape_cast %23 : vector<1xf32> to vector<1x1x1xf32>
      %25 = vector.extract %24[0, 0, 0] : f32 from vector<1x1x1xf32>
      %26 = vector.broadcast %25 : f32 to vector<1x1xf32>
      %27 = vector.shape_cast %26 : vector<1x1xf32> to vector<1x1xf32>
      %28 = vector.broadcast %27 : vector<1x1xf32> to vector<8x128xf32>
      %c0_16 = arith.constant 0 : index
      %c0_17 = arith.constant 0 : index
      %29 = vector.load %arg5[%c0_16, %c0_17] : memref<8x128xf32, #tpu.memory_space<vmem>>, vector<8x128xf32>
      tpu.vector_store %arg5[%c0_16, %c0_17], %28 {strides = array<i32>} : memref<8x128xf32, #tpu.memory_space<vmem>>, vector<8x128xf32>,
    } else {
    }
    return
  }
  func.func @transform_0(%arg0: i32, %arg1: i32) -> (i32, i32) {
    %c1_i32 = arith.constant 1 : i32
    %0 = arith.muli %arg0, %c1_i32 : i32
    %1 = arith.addi %0, %arg1 : i32
    %c0_i32 = arith.constant 0 : i32
    %c0_i32_0 = arith.constant 0 : i32
    return %1, %c0_i32 : i32, i32
  }
  func.func @transform_1(%arg0: i32, %arg1: i32) -> (i32, i32) {
    %c1_i32 = arith.constant 1 : i32
    %0 = arith.muli %arg0, %c1_i32 : i32
    %1 = arith.addi %0, %arg1 : i32
    %c0_i32 = arith.constant 0 : i32
    %c0_i32_0 = arith.constant 0 : i32
    return %1, %c0_i32 : i32, i32
  }
  func.func @transform_2(%arg0: i32, %arg1: i32) -> (i32, i32) {
    %c1_i32 = arith.constant 1 : i32
    %0 = arith.muli %arg0, %c1_i32 : i32
    %1 = arith.addi %0, %arg1 : i32
    %c0_i32 = arith.constant 0 : i32
    %c0_i32_0 = arith.constant 0 : i32
    return %1, %c0_i32 : i32, i32
  }
  func.func @transform_3(%arg0: i32, %arg1: i32) -> (i32, i32) {
    %c0_i32 = arith.constant 0 : i32
    %c0_i32_0 = arith.constant 0 : i32
    return %arg0, %c0_i32 : i32, i32
  }
}

</mosaic_0001>

<llo_original>
// kernel: tpu_custom_call.1
$region0: #{tpu_custom_call.1}
  #allocation0 [shape = 'u32[]', space=smem, size = 0x4, offset = 0x4, fixed_abs, tag = 'smem constant byte address 0x4 - core index']
  #allocation1 [shape = 'u32[144,128]{1,0:T(1,128)}', space=vmem, size = 0x12000, scoped, tag = 'internal scratch']
  #allocation2 [shape = 'f32[8,128]{1,0:T(8,128)}', space=vmem, size = 0x1000, scoped, tag = 'scratch operand']
  %s0 = inlined_call_operand.hbm [shape: f32[16,128], index: 0, kind: input, shape index: {}]
  %s1 = inlined_call_operand.hbm [shape: f32[16,128], index: 1, kind: input, shape index: {}]
  %s2 = inlined_call_operand.hbm [shape: f32[16,128], index: 2, kind: input, shape index: {}]
  %s3 = inlined_call_operand.hbm [shape: f32[16,128], index: 3, kind: output, shape index: {}]
  %s4 = sld [smem:[#allocation0]]
  $region65: #{tpu_custom_call.1} parent=0
    _
  %s6 = ssub.s32 1, %s4
  %s7 = scalar_select 0, %s6, %s4
  $region1: #{tpu_custom_call.1} parent=0
    #allocation3 [shape = 'u8[8192]{0}', space=vmem, size = 0x2000, scoped, tag = 'input window, operand 0']
    #allocation4 [shape = 's32[2]{0}', space=sflag, size = 0x8, scoped, tag = 'scoped memory for tpu_custom_call.1']
    #allocation5 [shape = 's32[2]{0}', space=sflag, size = 0x8, scoped, tag = 'scoped memory for tpu_custom_call.1']
    #allocation6 [shape = 'u8[8192]{0}', space=vmem, size = 0x2000, scoped, tag = 'input window, operand 1']
    #allocation7 [shape = 's32[2]{0}', space=sflag, size = 0x8, scoped, tag = 'scoped memory for tpu_custom_call.1']
    #allocation8 [shape = 'u8[8192]{0}', space=vmem, size = 0x2000, scoped, tag = 'input window, operand 2']
    #allocation9 [shape = 'u8[8192]{0}', space=vmem, size = 0x2000, scoped, tag = 'output window, operand 0']
    %8 = vsyncpa [#allocation4], 0
    %s9 = scalar_lea.sflag [#allocation4], 1
    %10 = vsyncpa %s9, 0
    %11 = vsyncpa [#allocation7], 0
    %s12 = scalar_lea.sflag [#allocation7], 1
    %13 = vsyncpa %s12, 0
    %14 = vsyncpa [#allocation5], 0
    %s15 = scalar_lea.sflag [#allocation5], 1
    %16 = vsyncpa %s15, 0
    loop: start=0, step=1, limit=4
    $region2: #{tpu_custom_call.1} parent=1 // loop_pre_header
      _
    $region3: #{tpu_custom_call.1} parent=1 // loop_header
      %s18 = sphi 0, %s22
      %p19 = scmp.ge.s32.totalorder %s18, 4
      %s25 = sphi 0, %s37
      %s26 = sphi 0, %s33
      %s27 = sphi 0, %s25
      %s28 = sphi 0, %s26
      %s29 = sphi 0, %s27
      %s30 = sphi 0, %s28
      %s42 = sphi 0, %s44
      %s45 = sphi 0, %s42
      %s46 = sphi 0, %s45
      %s62 = sphi 0, %s46
      %s70 = sphi 0, %s72
      %s73 = sphi 0, %s70
      %s74 = sphi 0, %s73
      %s90 = sphi 0, %s74
      %s98 = sphi 0, %s100
      %s101 = sphi 0, %s98
      %s102 = sphi 0, %s101
      %s118 = sphi 0, %s102
      %s124 = sphi 0, %s126
      %s127 = sphi 0, %s124
      %s128 = sphi 0, %s127
      %s144 = sphi 0, %s128
    $region4: #{tpu_custom_call.1} parent=1 // loop_header_branch
      %21 = sbr.rel (%p19) target = $region8
    $region5: #{tpu_custom_call.1} parent=1 // loop_body
      %s23 = ssub.s32 %s18, 1
      %s24 = ssub.s32 %s18, 2
      %s31 = sadd.s32 1, %s26
      %p32 = scmp.ge.s32.totalorder %s31, 1
      %s33 = scalar_select %p32, 0, %s31
      %s34 = sadd.s32 1, %s25
      %s35 = scalar_select %p32, %s34, %s25
      %p36 = scmp.ge.s32.totalorder %s35, 2
      %s37 = scalar_select %p36, 0, %s35
      %s38 = sadd.s32 %s25, %s26
      %s39 = sadd.s32 %s37, %s33
      %s40 = ssub.s32 %s38, %s39
      %p41 = scmp.eq.s32.totalorder %s40, 0
      %s43 = sadd.s32 %s42, 1
      %s44 = scalar_select %p41, %s42, %s43
      %p47 = pneg %p41
      %p48 = scmp.eq.s32.totalorder %s18, 1
      %p49 = por %p47, %p48
      %p50 = scmp.ne.s32.totalorder %s42, %s45
      %p51 = scmp.eq.s32.totalorder %s18, 0
      %p52 = por %p50, %p51
      %p53 = scmp.ne.s32.totalorder %s42, %s45
      %p54 = scmp.eq.s32.totalorder %s23, 1
      %p55 = por %p53, %p54
      %p56 = scmp.ne.s32.totalorder %s45, %s46
      %p57 = scmp.eq.s32.totalorder %s23, 0
      %p58 = por %p56, %p57
      %p59 = scmp.ne.s32.totalorder %s45, %s46
      %p60 = scmp.eq.s32.totalorder %s24, 1
      %p61 = por %p59, %p60
      %p63 = scmp.ne.s32.totalorder %s46, %s62
      %p64 = scmp.eq.s32.totalorder %s24, 0
      %p65 = por %p63, %p64
      %s66 = sadd.s32 %s25, %s26
      %s67 = sadd.s32 %s37, %s33
      %s68 = ssub.s32 %s66, %s67
      %p69 = scmp.eq.s32.totalorder %s68, 0
      %s71 = sadd.s32 %s70, 1
      %s72 = scalar_select %p69, %s70, %s71
      %p75 = pneg %p69
      %p76 = scmp.eq.s32.totalorder %s18, 1
      %p77 = por %p75, %p76
      %p78 = scmp.ne.s32.totalorder %s70, %s73
      %p79 = scmp.eq.s32.totalorder %s18, 0
      %p80 = por %p78, %p79
      %p81 = scmp.ne.s32.totalorder %s70, %s73
      %p82 = scmp.eq.s32.totalorder %s23, 1
      %p83 = por %p81, %p82
      %p84 = scmp.ne.s32.totalorder %s73, %s74
      %p85 = scmp.eq.s32.totalorder %s23, 0
      %p86 = por %p84, %p85
      %p87 = scmp.ne.s32.totalorder %s73, %s74
      %p88 = scmp.eq.s32.totalorder %s24, 1
      %p89 = por %p87, %p88
      %p91 = scmp.ne.s32.totalorder %s74, %s90
      %p92 = scmp.eq.s32.totalorder %s24, 0
      %p93 = por %p91, %p92
      %s94 = sadd.s32 %s25, %s26
      %s95 = sadd.s32 %s37, %s33
      %s96 = ssub.s32 %s94, %s95
      %p97 = scmp.eq.s32.totalorder %s96, 0
      %s99 = sadd.s32 %s98, 1
      %s100 = scalar_select %p97, %s98, %s99
      %p103 = pneg %p97
      %p104 = scmp.eq.s32.totalorder %s18, 1
      %p105 = por %p103, %p104
      %p106 = scmp.ne.s32.totalorder %s98, %s101
      %p107 = scmp.eq.s32.totalorder %s18, 0
      %p108 = por %p106, %p107
      %p109 = scmp.ne.s32.totalorder %s98, %s101
      %p110 = scmp.eq.s32.totalorder %s23, 1
      %p111 = por %p109, %p110
      %p112 = scmp.ne.s32.totalorder %s101, %s102
      %p113 = scmp.eq.s32.totalorder %s23, 0
      %p114 = por %p112, %p113
      %p115 = scmp.ne.s32.totalorder %s101, %s102
      %p116 = scmp.eq.s32.totalorder %s24, 1
      %p117 = por %p115, %p116
      %p119 = scmp.ne.s32.totalorder %s102, %s118
      %p120 = scmp.eq.s32.totalorder %s24, 0
      %p121 = por %p119, %p120
      %s122 = ssub.s32 %s25, %s37
      %p123 = scmp.eq.s32.totalorder %s122, 0
      %s125 = sadd.s32 %s124, 1
      %s126 = scalar_select %p123, %s124, %s125
      %p129 = pneg %p123
      %p130 = scmp.eq.s32.totalorder %s18, 1
      %p131 = por %p129, %p130
      %p132 = scmp.ne.s32.totalorder %s124, %s127
      %p133 = scmp.eq.s32.totalorder %s18, 0
      %p134 = por %p132, %p133
      %p135 = scmp.ne.s32.totalorder %s124, %s127
      %p136 = scmp.eq.s32.totalorder %s23, 1
      %p137 = por %p135, %p136
      %p138 = scmp.ne.s32.totalorder %s127, %s128
      %p139 = scmp.eq.s32.totalorder %s23, 0
      %p140 = por %p138, %p139
      %p141 = scmp.ne.s32.totalorder %s127, %s128
      %p142 = scmp.eq.s32.totalorder %s24, 1
      %p143 = por %p141, %p142
      %p145 = scmp.ne.s32.totalorder %s128, %s144
      %p146 = scmp.eq.s32.totalorder %s24, 0
      %p147 = por %p145, %p146
      %p148 = scmp.le.s32.totalorder 1, %s18
      %p149 = scmp.lt.s32.totalorder %s18, 3
      %p150 = pnand %p148, %p149
      %p151 = pneg %p150
      // Predicated region
      $region9: #{tpu_custom_call.1} parent=5 // pred_check
        _
      $region10: #{tpu_custom_call.1} parent=5 // pred_check_branch
        %153 = sbr.rel (%p150) target = $region12
      $region11: #{tpu_custom_call.1} parent=5 // pred_region
        %s154 = ssub.s32 %s18, 1
      $region12: #{tpu_custom_call.1} parent=5 // pred_fallthru
        _
      %p155 = scmp.lt.s32.totalorder %s18, 2
      // Predicated region
      $region13: #{tpu_custom_call.1} parent=5 // pred_check
        %p156 = pneg %p155
      $region14: #{tpu_custom_call.1} parent=5 // pred_check_branch
        %158 = sbr.rel (%p156) target = $region16
      $region15: #{tpu_custom_call.1} parent=5 // pred_region
        // Predicated region
        $region17: #{tpu_custom_call.1} parent=15 // pred_check
          %p159 = pneg %p52
        $region18: #{tpu_custom_call.1} parent=15 // pred_check_branch
          %161 = sbr.rel (%p159) target = $region20
        $region19: #{tpu_custom_call.1} parent=15 // pred_region
          %s162 = sand.u32 %s42, 1
          %s163 = scalar_lea.sflag [#allocation4], %s162
          %s164 = sand.u32 %s42, 1
          %s165 = smul.addr %s164, 8
          %s166 = scalar_lea.vmem [#allocation3], %s165
          %s167 = sadd.s32 %s25, %s26
          %s169 = ssub.s32 128, 128
          %170 = vsyncadd %s163, %s169
          %s171 = smul.addr %s167, 128
          %s172 = scalar_lea.hbm %s0, %s171
          %s174 = sshll.u32 %s166, 4
          %s175 = int_to_ptr.vmem [resolvable:$true] %s174
          %177 = dma.hbm_to_vmem [thread:$0]  %s172, 128, %s175, %s163
        $region20: #{tpu_custom_call.1} parent=15 // pred_fallthru
          _
        // Predicated region
        $region21: #{tpu_custom_call.1} parent=15 // pred_check
          %p178 = pneg %p80
        $region22: #{tpu_custom_call.1} parent=15 // pred_check_branch
          %180 = sbr.rel (%p178) target = $region24
        $region23: #{tpu_custom_call.1} parent=15 // pred_region
          %s181 = sand.u32 %s18, 1
          %s182 = scalar_lea.sflag [#allocation7], %s181
          %s183 = sand.u32 %s70, 1
          %s184 = smul.addr %s183, 8
          %s185 = scalar_lea.vmem [#allocation6], %s184
          %s186 = sadd.s32 %s25, %s26
          %s188 = ssub.s32 128, 128
          %189 = vsyncadd %s182, %s188
          %s190 = smul.addr %s186, 128
          %s191 = scalar_lea.hbm %s1, %s190
          %s193 = sshll.u32 %s185, 4
          %s194 = int_to_ptr.vmem [resolvable:$true] %s193
          %196 = dma.hbm_to_vmem [thread:$0]  %s191, 128, %s194, %s182
        $region24: #{tpu_custom_call.1} parent=15 // pred_fallthru
          _
        // Predicated region
        $region25: #{tpu_custom_call.1} parent=15 // pred_check
          %p197 = pneg %p108
        $region26: #{tpu_custom_call.1} parent=15 // pred_check_branch
          %199 = sbr.rel (%p197) target = $region28
        $region27: #{tpu_custom_call.1} parent=15 // pred_region
          %s200 = sand.u32 %s18, 1
          %s201 = scalar_lea.sflag [#allocation7], %s200
          %s202 = sand.u32 %s98, 1
          %s203 = smul.addr %s202, 8
          %s204 = scalar_lea.vmem [#allocation8], %s203
          %s205 = sadd.s32 %s25, %s26
          %s207 = ssub.s32 128, 128
          %208 = vsyncadd %s201, %s207
          %s209 = smul.addr %s205, 128
          %s210 = scalar_lea.hbm %s2, %s209
          %s212 = sshll.u32 %s204, 4
          %s213 = int_to_ptr.vmem [resolvable:$true] %s212
          %215 = dma.hbm_to_vmem [thread:$0]  %s210, 128, %s213, %s201
        $region28: #{tpu_custom_call.1} parent=15 // pred_fallthru
          _
      $region16: #{tpu_custom_call.1} parent=5 // pred_fallthru
        _
      %p216 = scmp.le.s32.totalorder 1, %s18
      %p217 = scmp.lt.s32.totalorder %s18, 3
      %p218 = pnand %p216, %p217
      %p219 = pneg %p218
      // Predicated region
      $region29: #{tpu_custom_call.1} parent=5 // pred_check
        _
      $region30: #{tpu_custom_call.1} parent=5 // pred_check_branch
        %221 = sbr.rel (%p218) target = $region32
      $region31: #{tpu_custom_call.1} parent=5 // pred_region
        %s222 = ssub.s32 %s18, 1
        %s223 = sand.u32 %s45, 1
        %s224 = scalar_lea.sflag [#allocation4], %s223
        %s225 = sand.u32 %s45, 1
        %s226 = smul.addr %s225, 8
        %s227 = scalar_lea.vmem [#allocation3], %s226
        // Predicated region
        $region33: #{tpu_custom_call.1} parent=31 // pred_check
          %p228 = pneg %p58
        $region34: #{tpu_custom_call.1} parent=31 // pred_check_branch
          %230 = sbr.rel (%p228) target = $region36
        $region35: #{tpu_custom_call.1} parent=31 // pred_region
          %231 = dma.done %s224, 128
        $region36: #{tpu_custom_call.1} parent=31 // pred_fallthru
          _
        %s232 = sand.u32 %s23, 1
        %s233 = scalar_lea.sflag [#allocation7], %s232
        %s234 = sand.u32 %s73, 1
        %s235 = smul.addr %s234, 8
        %s236 = scalar_lea.vmem [#allocation6], %s235
        // Predicated region
        $region37: #{tpu_custom_call.1} parent=31 // pred_check
          %p237 = pneg %p86
        $region38: #{tpu_custom_call.1} parent=31 // pred_check_branch
          %239 = sbr.rel (%p237) target = $region40
        $region39: #{tpu_custom_call.1} parent=31 // pred_region
          %240 = dma.done %s233, 128
        $region40: #{tpu_custom_call.1} parent=31 // pred_fallthru
          _
        %s241 = sand.u32 %s23, 1
        %s242 = scalar_lea.sflag [#allocation7], %s241
        %s243 = sand.u32 %s101, 1
        %s244 = smul.addr %s243, 8
        %s245 = scalar_lea.vmem [#allocation8], %s244
        // Predicated region
        $region41: #{tpu_custom_call.1} parent=31 // pred_check
          %p246 = pneg %p114
        $region42: #{tpu_custom_call.1} parent=31 // pred_check_branch
          %248 = sbr.rel (%p246) target = $region44
        $region43: #{tpu_custom_call.1} parent=31 // pred_region
          %249 = dma.done %s242, 128
        $region44: #{tpu_custom_call.1} parent=31 // pred_fallthru
          _
        %s250 = sand.u32 %s45, 1
        %s251 = scalar_lea.sflag [#allocation4], %s250
        %s252 = sand.u32 %s45, 1
        %s253 = smul.addr %s252, 8
        %s254 = scalar_lea.vmem [#allocation3], %s253
        %p255 = pneg %p58
        %p256 = pneg %p55
        %s257 = sand.u32 %s23, 1
        %s258 = scalar_lea.sflag [#allocation7], %s257
        %s259 = sand.u32 %s73, 1
        %s260 = smul.addr %s259, 8
        %s261 = scalar_lea.vmem [#allocation6], %s260
        %p262 = pneg %p86
        %p263 = pneg %p83
        %s264 = sand.u32 %s23, 1
        %s265 = scalar_lea.sflag [#allocation7], %s264
        %s266 = sand.u32 %s101, 1
        %s267 = smul.addr %s266, 8
        %s268 = scalar_lea.vmem [#allocation8], %s267
        %p269 = pneg %p114
        %p270 = pneg %p111
        %p271 = pneg %p140
        %p272 = pneg %p137
        %s273 = sand.u32 %s127, 1
        %s274 = scalar_lea.sflag [#allocation5], %s273
        %s275 = sand.u32 %s127, 1
        %s276 = smul.addr %s275, 8
        %s277 = scalar_lea.vmem [#allocation9], %s276
        %s278 = sadd.s32 %s27, %s28
        %s279 = sadd.s32 %s27, %s28
        %s280 = sadd.s32 %s27, %s28
        %p281 = scmp.eq.s32.totalorder %s28, 0
        // Predicated region
        $region45: #{tpu_custom_call.1} parent=31 // pred_check
          %p282 = pneg %p281
        $region46: #{tpu_custom_call.1} parent=31 // pred_check_branch
          %284 = sbr.rel (%p282) target = $region48
        $region47: #{tpu_custom_call.1} parent=31 // pred_region
          %285 = vst [vmem:[#allocation2] sm:$0xff] 0.0
        $region48: #{tpu_custom_call.1} parent=31 // pred_fallthru
          _
        %v286 = vld [vmem:[%s227] sm:$0xff]
        %v287 = vld [vmem:[%s236] sm:$0xff]
        %v288 = vld [vmem:[%s245] sm:$0xff]
        %v289 = vsub.f32 %v286, %v287
        %v290 = vmul.f32 %v289, %v289
        %v291 = vmul.f32 %v290, 0.125
        %v292 = vsub.f32 %v286, %v288
        %v293 = vmul.f32 %v292, %v292
        %v294 = vmul.f32 %v293, 0.125
        %v295 = vadd.f32 %v291, %v294
        %v296 = vld [vmem:[#allocation2] sm:$0xff]
        %v297 = vadd.f32 %v296, %v295
        %298 = vst [vmem:[#allocation2] sm:$0xff] %v297
        // Predicated region
        $region49: #{tpu_custom_call.1} parent=31 // pred_check
          %p299 = pneg %p281
        $region50: #{tpu_custom_call.1} parent=31 // pred_check_branch
          %301 = sbr.rel (%p299) target = $region52
        $region51: #{tpu_custom_call.1} parent=31 // pred_region
          %v302 = vld [vmem:[#allocation2] sm:$0xff]
          %303 = vadd.xlane.f32.xlu0 %v302
          %v304 = vpop.xlane.xlu0 %303
          %v305 = vrot.slane %v304, 4
          %v306 = vadd.f32 %v304, %v305
          %v307 = vrot.slane %v306, 2
          %v308 = vadd.f32 %v306, %v307
          %v309 = vrot.slane %v308, 1
          %v310 = vadd.f32 %v308, %v309
          %s311 = vtos %v310
          %v312 = vstv %s311
          %313 = vst [vmem:[%s277] sm:$0xff] %v312
        $region52: #{tpu_custom_call.1} parent=31 // pred_fallthru
          _
        %s314 = sand.u32 %s127, 1
        %s315 = scalar_lea.sflag [#allocation5], %s314
        %s316 = sand.u32 %s127, 1
        %s317 = smul.addr %s316, 8
        %s318 = scalar_lea.vmem [#allocation9], %s317
        // Predicated region
        $region53: #{tpu_custom_call.1} parent=31 // pred_check
          %p319 = pneg %p137
        $region54: #{tpu_custom_call.1} parent=31 // pred_check_branch
          %321 = sbr.rel (%p319) target = $region56
        $region55: #{tpu_custom_call.1} parent=31 // pred_region
          %s323 = ssub.s32 128, 128
          %324 = vsyncadd %s315, %s323
          %s325 = smul.addr %s27, 128
          %s326 = scalar_lea.hbm %s3, %s325
          %s328 = sshll.u32 %s318, 4
          %s329 = int_to_ptr.vmem [resolvable:$true] %s328
          %331 = dma.vmem_to_hbm [thread:$0]  %s329, 128, %s326, %s315
        $region56: #{tpu_custom_call.1} parent=31 // pred_fallthru
          _
      $region32: #{tpu_custom_call.1} parent=5 // pred_fallthru
        _
      %p332 = scmp.le.s32.totalorder 2, %s18
      // Predicated region
      $region57: #{tpu_custom_call.1} parent=5 // pred_check
        %p333 = pneg %p332
      $region58: #{tpu_custom_call.1} parent=5 // pred_check_branch
        %335 = sbr.rel (%p333) target = $region60
      $region59: #{tpu_custom_call.1} parent=5 // pred_region
        %s336 = ssub.s32 %s18, 2
        // Predicated region
        $region61: #{tpu_custom_call.1} parent=59 // pred_check
          %p337 = pneg %p143
        $region62: #{tpu_custom_call.1} parent=59 // pred_check_branch
          %339 = sbr.rel (%p337) target = $region64
        $region63: #{tpu_custom_call.1} parent=59 // pred_region
          %s340 = sand.u32 %s128, 1
          %s341 = scalar_lea.sflag [#allocation5], %s340
          %s342 = sand.u32 %s128, 1
          %s343 = smul.addr %s342, 8
          %s344 = scalar_lea.vmem [#allocation9], %s343
          %345 = dma.done %s341, 128
        $region64: #{tpu_custom_call.1} parent=59 // pred_fallthru
          _
      $region60: #{tpu_custom_call.1} parent=5 // pred_fallthru
        _
    $region6: #{tpu_custom_call.1} parent=1 // loop_footer
      %s22 = sadd.s32 1, %s18
    $region7: #{tpu_custom_call.1} parent=1 // loop_footer_branch
      %17 = sbr.rel target = $region3
    $region8: #{tpu_custom_call.1} parent=1 // loop_exit
      _
    %346 = vsyncpa [#allocation4], 1
    %s347 = scalar_lea.sflag [#allocation4], 1
    %348 = vsyncpa %s347, 1
    %349 = vsyncpa [#allocation7], 1
    %s350 = scalar_lea.sflag [#allocation7], 1
    %351 = vsyncpa %s350, 1
    %352 = vsyncpa [#allocation5], 1
    %s353 = scalar_lea.sflag [#allocation5], 1
    %354 = vsyncpa %s353, 1

</llo_original>
